<compile_context>
chip_gen: v7x
topology: tpu7x:2x2x1
jax: 0.10.0
libtpu: 0.0.40
codegen_flags: <defaults>
</compile_context>

<pallas_src>
import math
from functools import partial

import jax
import jax.numpy as jnp
from jax.experimental import pallas as pl
from jax.experimental.pallas import tpu as pltpu

LANE_WIDTH = 1024   # lane-dense last dim (multiple of 128)
TILE_ROWS = 512     # rows per grid step (multiple of 8); 512*1024*f32 = 2 MiB


# ----------------------------- Pallas kernels ------------------------------

def _fused_small_kernel(prev_ref, x_ref, out_ref, mean_ref, avg_ref,
                        *, n_valid, gamma):
    """Single-tile path: mean + subtract + EMA update in one HBM pass.

    The block equals the full (padded) 2D array, so there is no Pallas edge
    padding, and wrapper padding is zeros -> the unmasked sum is exact."""
    x = x_ref[...].astype(jnp.float32)
    mean = jnp.sum(x) / jnp.float32(n_valid)
    out_ref[...] = (x - mean).astype(out_ref.dtype)
    mean_ref[...] = mean.reshape(1, 1)
    avg_ref[...] = ((1.0 - gamma) * mean + gamma * prev_ref[0]).reshape(1, 1)


def _reduce_kernel(prev_ref, x_ref, mean_ref, avg_ref, acc_ref,
                   *, tile_rows, n_rows, n_valid, gamma):
    """Phase 1: tiled partial-sum -> global mean; EMA folded into finalize.

    acc_ref is a (1, LANE_WIDTH) VMEM scratch (resident across the
    'arbitrary' grid axis): each tile does a cheap sublane reduce; the
    cross-lane reduce happens exactly once at finalize.  Only the final
    partial tile (if any) needs row masking, because Pallas edge-block
    padding is undefined; wrapper zero-padding needs no mask."""
    i = pl.program_id(0)
    last = pl.num_programs(0) - 1

    @pl.when(i == 0)
    def _init():
        acc_ref[...] = jnp.zeros_like(acc_ref)

    x = x_ref[...].astype(jnp.float32)

    if n_rows % tile_rows == 0:
        # Static: every tile is fully in-bounds -> no masking anywhere.
        acc_ref[...] += jnp.sum(x, axis=0, keepdims=True)
    else:
        @pl.when(i != last)
        def _full_tile():
            acc_ref[...] += jnp.sum(x, axis=0, keepdims=True)

        @pl.when(i == last)
        def _partial_tile():
            r = jax.lax.broadcasted_iota(jnp.int32, x.shape, 0)
            xm = jnp.where((i * tile_rows + r) < n_rows, x, 0.0)
            acc_ref[...] += jnp.sum(xm, axis=0, keepdims=True)

    @pl.when(i == last)
    def _finalize():
        mean = jnp.sum(acc_ref[...]) / jnp.float32(n_valid)
        mean_ref[...] = mean.reshape(1, 1)
        avg_ref[...] = ((1.0 - gamma) * mean
                        + gamma * prev_ref[0]).reshape(1, 1)


def _subtract_kernel(s_ref, x_ref, out_ref):
    """Phase 2 / locked path: out = x - scalar (scalar held in SMEM).
    Out-of-bounds writes of a partial edge block are dropped by Pallas."""
    out_ref[...] = (x_ref[...].astype(jnp.float32)
                    - s_ref[0]).astype(out_ref.dtype)


# ------------------------------ glue wrappers -------------------------------

def _to_2d(x):
    """Flatten to a lane-dense (rows, LANE_WIDTH) view.  Zero padding is only
    added when numel % LANE_WIDTH != 0; otherwise this is a free reshape and
    the original dtype is preserved."""
    flat = x.reshape(-1)
    n = flat.shape[0]
    pad = (-n) % LANE_WIDTH
    if pad:
        flat = jnp.pad(flat, (0, pad))
    return flat.reshape(-1, LANE_WIDTH), n


def _from_2d(out2d, n, shape):
    flat = out2d.reshape(-1)
    if flat.shape[0] != n:
        flat = flat[:n]
    return flat.reshape(shape)


def _scalar_smem(v):
    return jnp.reshape(jnp.asarray(v, jnp.float32), (1,))


def _reduce_mean_ema(x2d, n_valid, prev_avg, gamma):
    rows, width = x2d.shape
    tr = min(TILE_ROWS, rows)
    grid = (pl.cdiv(rows, tr),)
    mean, new_avg = pl.pallas_call(
        partial(_reduce_kernel, tile_rows=tr, n_rows=rows,
                n_valid=n_valid, gamma=gamma),
        out_shape=(jax.ShapeDtypeStruct((1, 1), jnp.float32),
                   jax.ShapeDtypeStruct((1, 1), jnp.float32)),
        grid=grid,
        in_specs=[pl.BlockSpec(memory_space=pltpu.MemorySpace.SMEM),
                  pl.BlockSpec((tr, width), lambda i: (i, 0))],
        out_specs=(pl.BlockSpec((1, 1), lambda i: (0, 0)),
                   pl.BlockSpec((1, 1), lambda i: (0, 0))),
        scratch_shapes=[pltpu.VMEM((1, width), jnp.float32)],
        compiler_params=pltpu.CompilerParams(
            dimension_semantics=("arbitrary",)),
    )(_scalar_smem(prev_avg), x2d)
    return mean[0, 0], new_avg[0, 0]


def _subtract_scalar_2d(x2d, scalar):
    rows, width = x2d.shape
    tr = min(TILE_ROWS, rows)
    grid = (pl.cdiv(rows, tr),)
    return pl.pallas_call(
        _subtract_kernel,
        out_shape=jax.ShapeDtypeStruct((rows, width), x2d.dtype),
        grid=grid,
        in_specs=[pl.BlockSpec(memory_space=pltpu.MemorySpace.SMEM),
                  pl.BlockSpec((tr, width), lambda i: (i, 0))],
        out_specs=pl.BlockSpec((tr, width), lambda i: (i, 0)),
        compiler_params=pltpu.CompilerParams(
            dimension_semantics=("parallel",)),     # both TensorCores on v7x
    )(_scalar_smem(scalar), x2d)


@partial(jax.jit, static_argnames=("gamma",))
def moving_average_forward(x, prev_avg, gamma):
    """Returns (x - mean(x), (1-gamma)*mean(x) + gamma*prev_avg)."""
    x2d, n = _to_2d(x)
    rows, width = x2d.shape
    if rows <= TILE_ROWS:
        # Small input: single fused pass (one HBM read + one write).
        out2d, _mean, new_avg = pl.pallas_call(
            partial(_fused_small_kernel, n_valid=n, gamma=gamma),
            out_shape=(jax.ShapeDtypeStruct((rows, width), x.dtype),
                       jax.ShapeDtypeStruct((1, 1), jnp.float32),
                       jax.ShapeDtypeStruct((1, 1), jnp.float32)),
            grid=(1,),
            in_specs=[pl.BlockSpec(memory_space=pltpu.MemorySpace.SMEM),
                      pl.BlockSpec((rows, width), lambda i: (0, 0))],
            out_specs=(pl.BlockSpec((rows, width), lambda i: (0, 0)),
                       pl.BlockSpec((1, 1), lambda i: (0, 0)),
                       pl.BlockSpec((1, 1), lambda i: (0, 0))),
            compiler_params=pltpu.CompilerParams(
                dimension_semantics=("arbitrary",)),
        )(_scalar_smem(prev_avg), x2d)
        new_avg = new_avg[0, 0]
    else:
        # Large input: tiled, pipelined two-phase (reduce, then subtract).
        mean, new_avg = _reduce_mean_ema(x2d, n, prev_avg, gamma)
        out2d = _subtract_scalar_2d(x2d, mean)
    return _from_2d(out2d, n, x.shape), new_avg


@jax.jit
def subtract_scalar(x, s):
    """Locked path: x - stored running average (tiled, 'parallel' grid)."""
    x2d, n = _to_2d(x)
    return _from_2d(_subtract_scalar_2d(x2d, s), n, x.shape)


class MovingAverage:
    """Functional-state port of the PyTorch MovingAverage module (ax=None)."""

    def __init__(self, gamma=0.99, lock_cnt=math.inf, ax=None):
        assert 0 < gamma < 1
        self.avg = None          # device scalar (0-d f32) once initialized
        self.cnt = 0
        self.locked = False
        self.gamma = float(gamma)
        self.lock_cnt = lock_cnt
        self.ax = ax
        if ax is not None:
            # TODO(synk): axis-wise keepdim mean path (ax is not None) not implemented in the kernel.
            raise NotImplementedError("only ax=None (global mean) is implemented")

    def __call__(self, x):
        self.cnt += 1
        if self.cnt > self.lock_cnt:
            self.locked = True
        if self.locked:
            return subtract_scalar(x, self.avg)
        prev = self.avg if self.avg is not None else jnp.float32(0.0)
        # prev=0 reproduces the "self.avg is None -> (1-gamma)*avg" branch.
        out, new_avg = moving_average_forward(x, prev, self.gamma)
        self.avg = jax.lax.stop_gradient(new_avg)   # EMA fused into the kernel
        return out


# ---------------------------------- main ------------------------------------

if __name__ == "__main__":
    key = jax.random.PRNGKey(0)
    k1, k2, k3, k4, k5 = jax.random.split(key, 5)

    # --- small NCHW input: fused single-tile path ----------------------------
    x = jax.random.normal(k1, (2, 4, 16, 16), dtype=jnp.float32)
    ma = MovingAverage(gamma=0.99)
    y = jax.block_until_ready(ma(x))
    assert y.shape == x.shape and y.dtype == x.dtype
    assert jnp.allclose(y, x - jnp.mean(x), atol=1e-5, rtol=1e-5)
    assert jnp.allclose(ma.avg, (1.0 - 0.99) * jnp.mean(x),
                        atol=1e-6, rtol=1e-4)

    # second call exercises the EMA-update branch
    prev_avg = ma.avg
    y2 = jax.block_until_ready(ma(2.0 * x))
    assert jnp.allclose(y2, 2.0 * x - jnp.mean(2.0 * x), atol=1e-5, rtol=1e-5)
    assert jnp.allclose(ma.avg,
                        (1.0 - 0.99) * jnp.mean(2.0 * x) + 0.99 * prev_avg,
                        atol=1e-6, rtol=1e-4)

    # --- larger input, numel % 1024 != 0: tiled path with partial last tile --
    xl = jax.random.normal(k2, (2, 4, 270, 270), dtype=jnp.float32)
    mal = MovingAverage(gamma=0.99)
    yl = jax.block_until_ready(mal(xl))
    assert yl.shape == xl.shape and yl.dtype == xl.dtype
    assert jnp.allclose(yl, xl - jnp.mean(xl), atol=1e-4, rtol=1e-4)
    assert jnp.allclose(mal.avg, (1.0 - 0.99) * jnp.mean(xl),
                        atol=1e-5, rtol=1e-3)

    # --- larger input, exact multiple of the tile: static unmasked path ------
    xm = jax.random.normal(k3, (1024, 1024), dtype=jnp.float32)
    mam = MovingAverage(gamma=0.9)
    ym = jax.block_until_ready(mam(xm))
    assert jnp.allclose(ym, xm - jnp.mean(xm), atol=1e-4, rtol=1e-4)
    assert jnp.allclose(mam.avg, (1.0 - 0.9) * jnp.mean(xm),
                        atol=1e-5, rtol=1e-3)

    # --- bf16 input: dtype preserved end-to-end -------------------------------
    xb = jax.random.normal(k4, (2, 4, 16, 16)).astype(jnp.bfloat16)
    mab = MovingAverage(gamma=0.9)
    yb = jax.block_until_ready(mab(xb))
    assert yb.dtype == jnp.bfloat16 and yb.shape == xb.shape
    ref_b = xb.astype(jnp.float32) - jnp.mean(xb.astype(jnp.float32))
    assert jnp.allclose(yb.astype(jnp.float32), ref_b, atol=3e-2)

    # --- locked path: x - stored running average -----------------------------
    mlk = MovingAverage(gamma=0.99, lock_cnt=1)
    x1 = jax.random.normal(k5, (2, 4, 16, 16), dtype=jnp.float32)
    _ = jax.block_until_ready(mlk(x1))        # cnt=1: normal update
    stored = mlk.avg
    y3 = jax.block_until_ready(mlk(x))        # cnt=2 > lock_cnt: locked
    assert jnp.allclose(y3, x - stored, atol=1e-6, rtol=1e-5)

    print("KERNEL_OK")
</pallas_src>

<mosaic_0001>
module attributes {stable_mosaic.version = 11 : i64} {
  func.func @_fused_small_kernel(%arg0: i32, %arg1: memref<1xf32, #tpu.memory_space<smem>>, %arg2: memref<2x1024xf32, #tpu.memory_space<vmem>>, %arg3: memref<2x1024xf32, #tpu.memory_space<vmem>>, %arg4: memref<1x1xf32, #tpu.memory_space<vmem>>, %arg5: memref<1x1xf32, #tpu.memory_space<vmem>>) attributes {dimension_semantics = [#tpu.dimension_semantics<arbitrary>], iteration_bounds = array<i64: 1>, scalar_prefetch = 0 : i64, scratch_operands = 0 : i64, tpu.core_type = #tpu.core_type<tc>, window_params = [{transform_indices = @transform_0, window_bounds = array<i64: 1>}, {pipeline_mode = #tpu.pipeline_mode<synchronous>, transform_indices = @transform_1, window_bounds = array<i64: 2, 1024>}, {pipeline_mode = #tpu.pipeline_mode<synchronous>, transform_indices = @transform_2, window_bounds = array<i64: 2, 1024>}, {pipeline_mode = #tpu.pipeline_mode<synchronous>, transform_indices = @transform_3, window_bounds = array<i64: 1, 1>}, {pipeline_mode = #tpu.pipeline_mode<synchronous>, transform_indices = @transform_4, window_bounds = array<i64: 1, 1>}]} {
    %c0 = arith.constant 0 : index
    %c0_0 = arith.constant 0 : index
    %0 = vector.load %arg2[%c0, %c0_0] : memref<2x1024xf32, #tpu.memory_space<vmem>>, vector<2x1024xf32>
    %1 = vector.shape_cast %0 : vector<2x1024xf32> to vector<1x2x1024xf32>
    %cst = arith.constant dense<0.000000e+00> : vector<1xf32>
    %2 = vector.multi_reduction <add>, %1, %cst [1, 2] : vector<1x2x1024xf32> to vector<1xf32>
    %3 = vector.shape_cast %2 : vector<1xf32> to vector<1x1x1xf32>
    %4 = vector.extract %3[0, 0, 0] : f32 from vector<1x1x1xf32>
    %cst_1 = arith.constant 2.048000e+03 : f32
    %5 = arith.divf %4, %cst_1 : f32
    %6 = vector.broadcast %5 : f32 to vector<2x1024xf32>
    %7 = arith.subf %0, %6 : vector<2x1024xf32>
    %c0_2 = arith.constant 0 : index
    %c0_3 = arith.constant 0 : index
    %8 = vector.load %arg3[%c0_2, %c0_3] : memref<2x1024xf32, #tpu.memory_space<vmem>>, vector<2x1024xf32>
    tpu.vector_store %arg3[%c0_2, %c0_3], %7 {strides = array<i32>} : memref<2x1024xf32, #tpu.memory_space<vmem>>, vector<2x1024xf32>,
    %9 = vector.broadcast %5 : f32 to vector<1x1xf32>
    %c0_4 = arith.constant 0 : index
    %c0_5 = arith.constant 0 : index
    %10 = vector.load %arg4[%c0_4, %c0_5] : memref<1x1xf32, #tpu.memory_space<vmem>>, vector<1x1xf32>
    tpu.vector_store %arg4[%c0_4, %c0_5], %9 {strides = array<i32>} : memref<1x1xf32, #tpu.memory_space<vmem>>, vector<1x1xf32>,
    %cst_6 = arith.constant 0.00999999977 : f32
    %11 = arith.mulf %cst_6, %5 : f32
    %c0_7 = arith.constant 0 : index
    %12 = memref.load %arg1[%c0_7] : memref<1xf32, #tpu.memory_space<smem>>
    %cst_8 = arith.constant 9.900000e-01 : f32
    %13 = arith.mulf %cst_8, %12 : f32
    %14 = arith.addf %11, %13 : f32
    %15 = vector.broadcast %14 : f32 to vector<1x1xf32>
    %c0_9 = arith.constant 0 : index
    %c0_10 = arith.constant 0 : index
    %16 = vector.load %arg5[%c0_9, %c0_10] : memref<1x1xf32, #tpu.memory_space<vmem>>, vector<1x1xf32>
    tpu.vector_store %arg5[%c0_9, %c0_10], %15 {strides = array<i32>} : memref<1x1xf32, #tpu.memory_space<vmem>>, vector<1x1xf32>,
    return
  }
  func.func @transform_0(%arg0: i32) -> i32 {
    %c0_i32 = arith.constant 0 : i32
    %c0_i32_0 = arith.constant 0 : i32
    return %c0_i32 : i32
  }
  func.func @transform_1(%arg0: i32) -> (i32, i32) {
    %c0_i32 = arith.constant 0 : i32
    %c0_i32_0 = arith.constant 0 : i32
    %c0_i32_1 = arith.constant 0 : i32
    return %c0_i32, %c0_i32_0 : i32, i32
  }
  func.func @transform_2(%arg0: i32) -> (i32, i32) {
    %c0_i32 = arith.constant 0 : i32
    %c0_i32_0 = arith.constant 0 : i32
    %c0_i32_1 = arith.constant 0 : i32
    return %c0_i32, %c0_i32_0 : i32, i32
  }
  func.func @transform_3(%arg0: i32) -> (i32, i32) {
    %c0_i32 = arith.constant 0 : i32
    %c0_i32_0 = arith.constant 0 : i32
    %c0_i32_1 = arith.constant 0 : i32
    return %c0_i32, %c0_i32_0 : i32, i32
  }
  func.func @transform_4(%arg0: i32) -> (i32, i32) {
    %c0_i32 = arith.constant 0 : i32
    %c0_i32_0 = arith.constant 0 : i32
    %c0_i32_1 = arith.constant 0 : i32
    return %c0_i32, %c0_i32_0 : i32, i32
  }
}

</mosaic_0001>

<llo_original>
// kernel: moving_average_forward.1
$region0: #{moving_average_forward.1}
  #allocation0 [shape = 'u32[]', space=smem, size = 0x4, offset = 0x4, fixed_abs, tag = 'smem constant byte address 0x4 - core index']
  #allocation1 [shape = 'u32[144,128]{1,0:T(1,128)}', space=vmem, size = 0x12000, scoped, tag = 'internal scratch']
  #allocation2 [shape = 'f32[1]{0:T(128)S(6)}', space=smem, size = 0x200, scoped, tag = 'scoped memory for moving_average_forward.1']
  %s0 = inlined_call_operand.<no memory space> [shape: f32[1], index: 0, kind: input, shape index: {}]
  %s1 = inlined_call_operand.vmem [shape: f32[2,1024], index: 1, kind: input, shape index: {}]
  %s2 = inlined_call_operand.vmem [shape: f32[2,1024], index: 2, kind: output, shape index: {0}]
  %s3 = inlined_call_operand.hbm [shape: f32[1,1], index: 3, kind: output, shape index: {1}]
  %s4 = inlined_call_operand.hbm [shape: f32[1,1], index: 4, kind: output, shape index: {2}]
  %5 = xla_tuple %s2, %s3, %s4
  %s6 = sld [smem:[#allocation0]]
  $region34: #{moving_average_forward.1} parent=0
    _
  %s8 = ssub.s32 1, %s6
  %s9 = scalar_select 0, %s8, %s6
  %10 = sst [smem:[#allocation2]] %s0
  $region1: #{moving_average_forward.1} parent=0
    #allocation3 [shape = 'u8[512]{0}', space=vmem, size = 0x400, scoped, tag = 'output window, operand 1, single buffered']
    #allocation4 [shape = 's32[1]{0}', space=sflag, size = 0x4, scoped, tag = 'scoped memory for moving_average_forward.1']
    #allocation5 [shape = 'u8[512]{0}', space=vmem, size = 0x400, scoped, tag = 'output window, operand 2, single buffered']
    #allocation6 [shape = 's32[1]{0}', space=sflag, size = 0x4, scoped, tag = 'scoped memory for moving_average_forward.1']
    %11 = vsyncpa [#allocation4], 0
    %12 = vsyncpa [#allocation6], 0
    // Predicated region
    $region2: #{moving_average_forward.1} parent=1 // pred_check
      _
    $region3: #{moving_average_forward.1} parent=1 // pred_check_branch
      %14 = sbr.rel (0) target = $region5
    $region4: #{moving_average_forward.1} parent=1 // pred_region
      _
    $region5: #{moving_average_forward.1} parent=1 // pred_fallthru
      _
    // Predicated region
    $region6: #{moving_average_forward.1} parent=1 // pred_check
      _
    $region7: #{moving_average_forward.1} parent=1 // pred_check_branch
      %16 = sbr.rel (0) target = $region9
    $region8: #{moving_average_forward.1} parent=1 // pred_region
      _
    $region9: #{moving_average_forward.1} parent=1 // pred_fallthru
      _
    %v17 = vld [vmem:[%s1] sm:$0xff]
    %v18 = vld [vmem:[%s1 + $0x8] sm:$0xff]
    %v21 = vcombine.high %v17, %v17
    %v23 = vunpack.c.l.s4 1983009808
    %v24 = vunpack.c.0.s8 %v23
    %v25 = vlaneseq
    %v26 = vshrl.u32 %v25, 7
    %v27 = vsub.s32 %v24, %v26
    %v28 = vrot.slane %v17, %v27
    %v30 = vunpack.c.l.s4 1983009808
    %v31 = vunpack.c.0.s8 %v30
    %v32 = vlaneseq
    %v33 = vshrl.u32 %v32, 7
    %v34 = vsub.s32 %v31, %v33
    %v35 = vrot.slane %v21, %v34
    %v36 = vcombine.high %v28, %v28
    %v37 = vcombine.high %v35, %v35
    %v38 = vcombine.high %v18, %v18
    %v40 = vunpack.c.l.s4 1983009808
    %v41 = vunpack.c.0.s8 %v40
    %v42 = vlaneseq
    %v43 = vshrl.u32 %v42, 7
    %v44 = vsub.s32 %v41, %v43
    %v45 = vrot.slane %v18, %v44
    %v47 = vunpack.c.l.s4 1983009808
    %v48 = vunpack.c.0.s8 %v47
    %v49 = vlaneseq
    %v50 = vshrl.u32 %v49, 7
    %v51 = vsub.s32 %v48, %v50
    %v52 = vrot.slane %v38, %v51
    %v53 = vcombine.high %v45, %v45
    %v54 = vcombine.high %v52, %v52
    %vm63 = vcmask 1041408
    %v64 = vsel %vm63, %v28, 0.0
    %v65 = vsel %vm63, %v36, 0.0
    %v66 = vadd.f32 %v64, %v65
    %v67 = vsel %vm63, %v35, 0.0
    %v68 = vadd.f32 %v66, %v67
    %v69 = vsel %vm63, %v37, 0.0
    %v70 = vadd.f32 %v68, %v69
    %v71 = vsel %vm63, %v45, 0.0
    %v72 = vadd.f32 %v70, %v71
    %v73 = vsel %vm63, %v53, 0.0
    %v74 = vadd.f32 %v72, %v73
    %v75 = vsel %vm63, %v52, 0.0
    %v76 = vadd.f32 %v74, %v75
    %v77 = vsel %vm63, %v54, 0.0
    %v78 = vadd.f32 %v76, %v77
    %79 = vadd.xlane.f32.xlu0 %v78
    %v80 = vpop.xlane.xlu0 %79
    %v81 = vrot.slane %v80, 4
    %v82 = vadd.f32 %v80, %v81
    %v83 = vrot.slane %v82, 2
    %v84 = vadd.f32 %v82, %v83
    %v85 = vrot.slane %v84, 1
    %v86 = vadd.f32 %v84, %v85
    %s87 = vtos %v86
    %v88 = vrcp.pop 2048.0
    %s89 = vtos %v88
    %s90 = smul.f32 %s87, %s89
    %v91 = vstv %s90
    %v92 = vsub.f32 %v17, %v91
    %v93 = vsub.f32 %v18, %v91
    %94 = vst [vmem:[%s2] sm:$0xff] %v92
    %95 = vst [vmem:[%s2 + $0x8] sm:$0xff] %v93
    %vm96 = vcmask 0
    %97 = vst.msk [vmem:[#allocation3] sm:$0x1] %vm96, %v91
    %s98 = smul.f32 %s90, 0.01
    %s99 = sld [smem:[#allocation2]]
    %s100 = smul.f32 %s99, 0.99
    %s101 = sadd.f32 %s98, %s100
    %v102 = vstv %s101
    %103 = vst.msk [vmem:[#allocation5] sm:$0x1] %vm96, %v102
    // Predicated region
    $region10: #{moving_average_forward.1} parent=1 // pred_check
      _
    $region11: #{moving_average_forward.1} parent=1 // pred_check_branch
      %105 = sbr.rel (0) target = $region13
    $region12: #{moving_average_forward.1} parent=1 // pred_region
      _
    $region13: #{moving_average_forward.1} parent=1 // pred_fallthru
      _
    // Predicated region
    $region14: #{moving_average_forward.1} parent=1 // pred_check
      _
    $region15: #{moving_average_forward.1} parent=1 // pred_check_branch
      %107 = sbr.rel (0) target = $region17
    $region16: #{moving_average_forward.1} parent=1 // pred_region
      %s109 = ssub.s32 16, 16
      %110 = vsyncadd [#allocation4], %s109
      %s112 = sshll.u32 [#allocation3], 4
      %s113 = int_to_ptr.vmem [resolvable:$true] %s112
      %115 = dma.vmem_to_hbm [thread:$0]  %s113, 16, %s3, [#allocation4]
    $region17: #{moving_average_forward.1} parent=1 // pred_fallthru
      _
    // Predicated region
    $region18: #{moving_average_forward.1} parent=1 // pred_check
      _
    $region19: #{moving_average_forward.1} parent=1 // pred_check_branch
      %117 = sbr.rel (0) target = $region21
    $region20: #{moving_average_forward.1} parent=1 // pred_region
      %s119 = ssub.s32 16, 16
      %120 = vsyncadd [#allocation6], %s119
      %s122 = sshll.u32 [#allocation5], 4
      %s123 = int_to_ptr.vmem [resolvable:$true] %s122
      %125 = dma.vmem_to_hbm [thread:$0]  %s123, 16, %s4, [#allocation6]
    $region21: #{moving_average_forward.1} parent=1 // pred_fallthru
      _
    // Predicated region
    $region22: #{moving_average_forward.1} parent=1 // pred_check
      _
    $region23: #{moving_average_forward.1} parent=1 // pred_check_branch
      %127 = sbr.rel (0) target = $region25
    $region24: #{moving_average_forward.1} parent=1 // pred_region
      _
    $region25: #{moving_average_forward.1} parent=1 // pred_fallthru
      _
    // Predicated region
    $region26: #{moving_average_forward.1} parent=1 // pred_check
      _
    $region27: #{moving_average_forward.1} parent=1 // pred_check_branch
      %129 = sbr.rel (0) target = $region29
    $region28: #{moving_average_forward.1} parent=1 // pred_region
      %130 = dma.done [#allocation4], 16
    $region29: #{moving_average_forward.1} parent=1 // pred_fallthru
      _
    // Predicated region
    $region30: #{moving_average_forward.1} parent=1 // pred_check
      _
    $region31: #{moving_average_forward.1} parent=1 // pred_check_branch
      %132 = sbr.rel (0) target = $region33
    $region32: #{moving_average_forward.1} parent=1 // pred_region
      %133 = dma.done [#allocation6], 16
    $region33: #{moving_average_forward.1} parent=1 // pred_fallthru
      _
    %134 = vsyncpa [#allocation4], 1
    %135 = vsyncpa [#allocation6], 1

</llo_original>
